<compile_context>
chip_gen: v5e
topology: v5e:2x2
jax: 0.10.0
libtpu: 0.0.40
codegen_flags: <defaults>
</compile_context>

<pallas_src>
import numpy as np
import jax
import jax.numpy as jnp
from jax.experimental import pallas as pl
from jax.experimental.pallas import tpu as pltpu


# ----------------------------- model hyper-params ---------------------------
N_USERS = 48
N_ITEMS = 80
N_NODES = N_USERS + N_ITEMS          # 128 -> one (8,128)-aligned tile
EMB_DIM = 32
N_LAYERS = 3
BATCH = 8


# ------------------------------ fused Pallas kernel --------------------------
def _lightgcn_fwd_kernel(p_t_ref, e0_t_ref, idx_ref, gamma_ref):
    """Fused LightGCN forward (propagation + gather + score).

    p_t_ref:   (N_NODES, N_NODES) f32  -- P^T, P = (I + A + A^2 + A^3)/(L+1)
    e0_t_ref:  (EMB_DIM, N_NODES) f32  -- E0^T (node axis on lanes)
    idx_ref:   (2*BATCH, 1) int32      -- [user indices ; item indices + N_USERS]
    gamma_ref: (BATCH, 1) f32          -- output scores
    """
    # Single MXU matmul: light_out^T = E0^T @ P^T, lane-dense (D, N) result.
    light_out_t = jnp.dot(e0_t_ref[...], p_t_ref[...],
                          preferred_element_type=jnp.float32)          # (D, N)

    # Lane-dense selection mask (2B, N) = (16, 128): 2 full f32 vregs.
    node_iota = jax.lax.broadcasted_iota(jnp.int32, (2 * BATCH, N_NODES), 1)
    sel = (node_iota == idx_ref[...]).astype(jnp.float32)              # (2B, N)

    # One gather-matmul contracting the node/lane axis: (2B, N) x (D, N) -> (2B, D).
    gathered = jax.lax.dot_general(
        sel, light_out_t,
        dimension_numbers=(((1,), (1,)), ((), ())),
        preferred_element_type=jnp.float32)                            # (2B, D)

    u_emb = gathered[:BATCH, :]                                        # (B, D)
    i_emb = gathered[BATCH:, :]                                        # (B, D)

    # gamma[b] = sum_d u_emb[b, d] * i_emb[b, d]
    gamma_ref[...] = jnp.sum(u_emb * i_emb, axis=1, keepdims=True)     # (B, 1)


def _lightgcn_fwd_call(p_t, e0_t, idx):
    return pl.pallas_call(
        _lightgcn_fwd_kernel,
        out_shape=jax.ShapeDtypeStruct((BATCH, 1), jnp.float32),
        in_specs=[
            pl.BlockSpec(memory_space=pltpu.MemorySpace.VMEM),
            pl.BlockSpec(memory_space=pltpu.MemorySpace.VMEM),
            pl.BlockSpec(memory_space=pltpu.MemorySpace.VMEM),
        ],
        out_specs=pl.BlockSpec(memory_space=pltpu.MemorySpace.VMEM),
    )(p_t, e0_t, idx)


# --------------------------- plain-JAX glue / setup --------------------------
def normalized_adjacency_dense(urm):
    """Dense version of normalized_adjacency_matrix (no self connections)."""
    n_u, n_i = urm.shape
    top = jnp.concatenate([jnp.zeros((n_u, n_u), jnp.float32), urm], axis=1)
    bot = jnp.concatenate([urm.T, jnp.zeros((n_i, n_i), jnp.float32)], axis=1)
    a = jnp.concatenate([top, bot], axis=0)
    d_inv = 1.0 / (jnp.sqrt(jnp.sum(a, axis=1)) + 1e-6)
    return (d_inv[:, None] * a * d_inv[None, :]).astype(jnp.float32)


def build_propagation_matrix_t(a_tilde):
    """P^T with P = (I + A + A^2 + ... + A^L) / (L + 1).

    Computed once at setup time (the graph is static across forward calls),
    exactly like self.Graph in the PyTorch module's __init__.
    """
    n = a_tilde.shape[0]
    eye = jnp.eye(n, dtype=jnp.float32)
    acc = eye
    cur = eye
    for _ in range(N_LAYERS):
        cur = a_tilde @ cur
        acc = acc + cur
    p = acc * (1.0 / float(N_LAYERS + 1))
    return jnp.asarray(p.T, dtype=jnp.float32)                         # (N, N)


@jax.jit
def lightgcn_forward(p_t, emb_user, emb_item, users, items):
    """Equivalent of _LightGCNModel.forward(users, items) (eval mode, no dropout)."""
    # One-time layout plumbing (XLA, fused under this jit): node axis -> lanes.
    e0_t = jnp.concatenate([emb_user, emb_item], axis=0).T             # (D, N)
    idx = jnp.concatenate(
        [users.astype(jnp.int32), items.astype(jnp.int32) + N_USERS]
    ).reshape(2 * BATCH, 1)                                            # (2B, 1)
    gamma = _lightgcn_fwd_call(p_t, e0_t, idx)                         # (B, 1)
    return gamma[:, 0]


# TODO(synk): training-time sparse-graph dropout (__dropout_x) is not implemented;
# forward() in eval mode never uses it.


# ---------------------------------- main -------------------------------------
if __name__ == "__main__":
    key = jax.random.PRNGKey(0)
    k_urm, k_eu, k_ei, k_u, k_i = jax.random.split(key, 5)

    # Synthetic interaction matrix (deterministic), ensure no all-zero rows/cols.
    urm = (jax.random.uniform(k_urm, (N_USERS, N_ITEMS)) < 0.1).astype(jnp.float32)
    urm = jnp.maximum(urm, jnp.eye(N_USERS, N_ITEMS, dtype=jnp.float32))

    a_tilde = normalized_adjacency_dense(urm)
    p_t = build_propagation_matrix_t(a_tilde)     # static graph polynomial (setup)

    # Embedding tables: normal_(std=0.1), deterministic init.
    emb_user = (0.1 * jax.random.normal(k_eu, (N_USERS, EMB_DIM))).astype(jnp.float32)
    emb_item = (0.1 * jax.random.normal(k_ei, (N_ITEMS, EMB_DIM))).astype(jnp.float32)

    users = jax.random.randint(k_u, (BATCH,), 0, N_USERS)
    items = jax.random.randint(k_i, (BATCH,), 0, N_ITEMS)

    gamma = jax.block_until_ready(
        lightgcn_forward(p_t, emb_user, emb_item, users, items)
    )

    # Pure-JAX reference (mirrors the PyTorch computer() layer-by-layer loop).
    all_emb = jnp.concatenate([emb_user, emb_item], axis=0)
    embs = [all_emb]
    cur = all_emb
    for _ in range(N_LAYERS):
        cur = a_tilde @ cur
        embs.append(cur)
    light_out_ref = jnp.mean(jnp.stack(embs, axis=1), axis=1)
    u_ref = light_out_ref[:N_USERS][users]
    i_ref = light_out_ref[N_USERS:][items]
    gamma_ref = jnp.sum(u_ref * i_ref, axis=1)

    assert gamma.shape == (BATCH,)
    assert np.allclose(np.asarray(gamma), np.asarray(gamma_ref), rtol=1e-4, atol=1e-5)
    print("KERNEL_OK")
</pallas_src>

<mosaic_0001>
module attributes {stable_mosaic.version = 11 : i64} {
  func.func @_lightgcn_fwd_kernel(%arg0: memref<128x128xf32, #tpu.memory_space<vmem>>, %arg1: memref<32x128xf32, #tpu.memory_space<vmem>>, %arg2: memref<16x1xi32, #tpu.memory_space<vmem>>, %arg3: memref<8x1xf32, #tpu.memory_space<vmem>>) attributes {dimension_semantics = [], scalar_prefetch = 0 : i64, scratch_operands = 0 : i64, tpu.core_type = #tpu.core_type<tc>} {
    %c0 = arith.constant 0 : index
    %c0_0 = arith.constant 0 : index
    %0 = vector.load %arg1[%c0, %c0_0] : memref<32x128xf32, #tpu.memory_space<vmem>>, vector<32x128xf32>
    %c0_1 = arith.constant 0 : index
    %c0_2 = arith.constant 0 : index
    %1 = vector.load %arg0[%c0_1, %c0_2] : memref<128x128xf32, #tpu.memory_space<vmem>>, vector<128x128xf32>
    %cst = arith.constant dense<0.000000e+00> : vector<32x128xf32>
    %2 = tpu.matmul %0, %1, %cst {dimension_numbers = #tpu.dot_dimension_numbers<[1], [0], [0], [1], [0, 0, 1, 1], [], []>} : vector<32x128xf32>, vector<128x128xf32>, vector<32x128xf32> -> vector<32x128xf32>
    %3 = tpu.iota {dimensions = array<i32: 1>} : vector<16x128xi32>
    %c0_3 = arith.constant 0 : index
    %c0_4 = arith.constant 0 : index
    %4 = vector.load %arg2[%c0_3, %c0_4] : memref<16x1xi32, #tpu.memory_space<vmem>>, vector<16x1xi32>
    %5 = vector.broadcast %4 : vector<16x1xi32> to vector<16x128xi32>
    %6 = arith.cmpi eq, %3, %5 : vector<16x128xi32>
    %7 = arith.extui %6 : vector<16x128xi1> to vector<16x128xi32>
    %8 = arith.sitofp %7 : vector<16x128xi32> to vector<16x128xf32>
    %cst_5 = arith.constant dense<0.000000e+00> : vector<16x32xf32>
    %9 = tpu.matmul %8, %2, %cst_5 {dimension_numbers = #tpu.dot_dimension_numbers<[1], [1], [0], [0], [0, 0, 1, 0], [], []>} : vector<16x128xf32>, vector<32x128xf32>, vector<16x32xf32> -> vector<16x32xf32>
    %10 = vector.extract_strided_slice %9 {offsets = [0, 0], sizes = [8, 32], strides = [1, 1]} : vector<16x32xf32> to vector<8x32xf32>
    %11 = vector.extract_strided_slice %9 {offsets = [8, 0], sizes = [8, 32], strides = [1, 1]} : vector<16x32xf32> to vector<8x32xf32>
    %12 = arith.mulf %10, %11 : vector<8x32xf32>
    %cst_6 = arith.constant dense<0.000000e+00> : vector<8xf32>
    %13 = vector.multi_reduction <add>, %12, %cst_6 [1] : vector<8x32xf32> to vector<8xf32>
    %14 = vector.shape_cast %13 : vector<8xf32> to vector<8x1xf32>
    %c0_7 = arith.constant 0 : index
    %c0_8 = arith.constant 0 : index
    %15 = vector.load %arg3[%c0_7, %c0_8] : memref<8x1xf32, #tpu.memory_space<vmem>>, vector<8x1xf32>
    tpu.vector_store %arg3[%c0_7, %c0_8], %14 {strides = array<i32>} : memref<8x1xf32, #tpu.memory_space<vmem>>, vector<8x1xf32>,
    return
  }
}

</mosaic_0001>

<llo_original>
// kernel: lightgcn_forward.1
$region0: #{lightgcn_forward.1}
  #allocation0 [shape = 'u32[]', space=smem, size = 0x4, offset = 0x4, fixed_abs, tag = 'smem constant byte address 0x4 - core index']
  #allocation1 [shape = 'u32[72,128]{1,0:T(1,128)}', space=vmem, size = 0x9000, scoped, tag = 'internal scratch']
  %s0 = inlined_call_operand.hbm [shape: f32[128,128], index: 0, kind: input, shape index: {}]
  %s1 = inlined_call_operand.vmem [shape: f32[32,128], index: 1, kind: input, shape index: {}]
  %s2 = inlined_call_operand.vmem [shape: s32[16,1], index: 2, kind: input, shape index: {}]
  %s3 = inlined_call_operand.vmem [shape: f32[8,1], index: 3, kind: output, shape index: {}]
  %s4 = sld [smem:[#allocation0]]
  $region26: #{lightgcn_forward.1} parent=0
    _
  %s6 = ssub.s32 1, %s4
  %s7 = scalar_select 0, %s6, %s4
  $region1: #{lightgcn_forward.1} parent=0
    #allocation2 [shape = 'u8[65536]{0}', space=vmem, size = 0x10000, scoped, tag = 'input window, operand 0, single buffered']
    #allocation3 [shape = 's32[1]{0}', space=sflag, size = 0x4, scoped, tag = 'scoped memory for lightgcn_forward.1']
    %8 = vsyncpa [#allocation3], 0
    // Predicated region
    $region2: #{lightgcn_forward.1} parent=1 // pred_check
      _
    $region3: #{lightgcn_forward.1} parent=1 // pred_check_branch
      %10 = sbr.rel (0) target = $region5
    $region4: #{lightgcn_forward.1} parent=1 // pred_region
      %12 = vsyncadd [#allocation3], 0
      %s13 = sshll.u32 %s0, 4
      %s14 = int_to_ptr.hbm [resolvable:$true] %s13
      %s15 = sshll.u32 [#allocation2], 4
      %s16 = int_to_ptr.vmem [resolvable:$true] %s15
      %21 = dma.hbm_to_vmem [thread:$0]  %s14, 2048, %s16, [#allocation3], 128, 128, 8
    $region5: #{lightgcn_forward.1} parent=1 // pred_fallthru
      _
    // Predicated region
    $region6: #{lightgcn_forward.1} parent=1 // pred_check
      _
    $region7: #{lightgcn_forward.1} parent=1 // pred_check_branch
      %23 = sbr.rel (0) target = $region9
    $region8: #{lightgcn_forward.1} parent=1 // pred_region
      _
    $region9: #{lightgcn_forward.1} parent=1 // pred_fallthru
      _
    // Predicated region
    $region10: #{lightgcn_forward.1} parent=1 // pred_check
      _
    $region11: #{lightgcn_forward.1} parent=1 // pred_check_branch
      %25 = sbr.rel (0) target = $region13
    $region12: #{lightgcn_forward.1} parent=1 // pred_region
      _
    $region13: #{lightgcn_forward.1} parent=1 // pred_fallthru
      _
    // Predicated region
    $region14: #{lightgcn_forward.1} parent=1 // pred_check
      _
    $region15: #{lightgcn_forward.1} parent=1 // pred_check_branch
      %27 = sbr.rel (0) target = $region17
    $region16: #{lightgcn_forward.1} parent=1 // pred_region
      %29 = dma.done [#allocation3], 2048
    $region17: #{lightgcn_forward.1} parent=1 // pred_fallthru
      _
    %v30 = vld [vmem:[%s1] sm:$0xff]
    %v31 = vld [vmem:[%s1 + $0x8] sm:$0xff]
    %v32 = vld [vmem:[%s1 + $0x10] sm:$0xff]
    %v33 = vld [vmem:[%s1 + $0x18] sm:$0xff]
    %v34 = vld [vmem:[#allocation2] sm:$0xff]
    %v35 = vld [vmem:[#allocation2 + $0x8] sm:$0xff]
    %v36 = vld [vmem:[#allocation2 + $0x10] sm:$0xff]
    %v37 = vld [vmem:[#allocation2 + $0x18] sm:$0xff]
    %v38 = vld [vmem:[#allocation2 + $0x20] sm:$0xff]
    %v39 = vld [vmem:[#allocation2 + $0x28] sm:$0xff]
    %v40 = vld [vmem:[#allocation2 + $0x30] sm:$0xff]
    %v41 = vld [vmem:[#allocation2 + $0x38] sm:$0xff]
    %v42 = vld [vmem:[#allocation2 + $0x40] sm:$0xff]
    %v43 = vld [vmem:[#allocation2 + $0x48] sm:$0xff]
    %v44 = vld [vmem:[#allocation2 + $0x50] sm:$0xff]
    %v45 = vld [vmem:[#allocation2 + $0x58] sm:$0xff]
    %v46 = vld [vmem:[#allocation2 + $0x60] sm:$0xff]
    %v47 = vld [vmem:[#allocation2 + $0x68] sm:$0xff]
    %v48 = vld [vmem:[#allocation2 + $0x70] sm:$0xff]
    %v49 = vld [vmem:[#allocation2 + $0x78] sm:$0xff]
    %50 = vmatpush.msra.mxu0 %v49
    %51 = vmatpush.msra.mxu0 %v48
    %52 = vmatpush.msra.mxu0 %v47
    %53 = vmatpush.msra.mxu0 %v46
    %54 = vmatpush.msra.mxu0 %v45
    %55 = vmatpush.msra.mxu0 %v44
    %56 = vmatpush.msra.mxu0 %v43
    %57 = vmatpush.msra.mxu0 %v42
    %58 = vmatpush.msra.mxu0 %v41
    %59 = vmatpush.msra.mxu0 %v40
    %60 = vmatpush.msra.mxu0 %v39
    %61 = vmatpush.msra.mxu0 %v38
    %62 = vmatpush.msra.mxu0 %v37
    %63 = vmatpush.msra.mxu0 %v36
    %64 = vmatpush.msra.mxu0 %v35
    %65 = vmatpush.msra.mxu0 %v34
    %66 = vmatmul.f32.gmra.mxu0 %v30
    %v67 = vpop.f32.mrf.mxu0
    %v68 = vadd.f32 0.0, %v67
    %69 = vmatmul.f32.gmra.mxu0 %v31
    %v70 = vpop.f32.mrf.mxu0
    %v71 = vadd.f32 0.0, %v70
    %72 = vmatmul.f32.gmra.mxu0 %v32
    %v73 = vpop.f32.mrf.mxu0
    %v74 = vadd.f32 0.0, %v73
    %75 = vmatmul.f32.gmra.mxu0 %v33
    %v76 = vpop.f32.mrf.mxu0
    %v77 = vadd.f32 0.0, %v76
    %78 = vdwg.mxu0
    %v79 = vlaneseq
    %v80 = vand.u32 %v79, 127
    %v81 = vld [vmem:[%s2] sm:$0xff]
    %v82 = vld [vmem:[%s2 + $0x8] sm:$0xff]
    %83 = vset.pattern.permute.xlu0 0
    %84 = vperm.xlu0 %83, %v81
    %v85 = vpop.permute.xlu0 %84
    %86 = vset.pattern.permute.xlu0 0
    %87 = vperm.xlu0 %86, %v82
    %v88 = vpop.permute.xlu0 %87
    %vm89 = vcmp.eq.s32.totalorder %v80, %v85
    %vm90 = vcmp.eq.s32.totalorder %v80, %v88
    %v91 = vsel %vm89, 1, 0
    %v92 = vsel %vm90, 1, 0
    %v93 = vcvt.s32.f32 %v91
    %v94 = vcvt.s32.f32 %v92
    %95 = vmatpush.xpose.msra.mxu0 0.0
    %96 = vmatpush.xpose.msra.mxu0 0.0
    %97 = vmatpush.xpose.msra.mxu0 0.0
    %98 = vmatpush.xpose.msra.mxu0 0.0
    %99 = vmatpush.xpose.msra.mxu0 0.0
    %100 = vmatpush.xpose.msra.mxu0 0.0
    %101 = vmatpush.xpose.msra.mxu0 0.0
    %102 = vmatpush.xpose.msra.mxu0 0.0
    %103 = vmatpush.xpose.msra.mxu0 0.0
    %104 = vmatpush.xpose.msra.mxu0 0.0
    %105 = vmatpush.xpose.msra.mxu0 0.0
    %106 = vmatpush.xpose.msra.mxu0 0.0
    %107 = vmatpush.xpose.msra.mxu0 %v77
    %108 = vmatpush.xpose.msra.mxu0 %v74
    %109 = vmatpush.xpose.msra.mxu0 %v71
    %110 = vmatpush.xpose.msra.mxu0 %v68
    %111 = vmatmul.f32.gmra.mxu0 %v93
    %v112 = vpop.f32.mrf.mxu0
    %v113 = vadd.f32 0.0, %v112
    %114 = vmatmul.f32.gmra.mxu0 %v94
    %v115 = vpop.f32.mrf.mxu0
    %v116 = vadd.f32 0.0, %v115
    %117 = vdwg.mxu0
    %v118 = vmul.f32 %v113, %v116
    %vm119 = vcmask 261120
    %v120 = vsel %vm119, %v118, 0.0
    %121 = vadd.xlane.f32.xlu0 %v120
    %v122 = vpop.xlane.xlu0 %121
    %vm123 = vcmask 7168
    %124 = vst.msk [vmem:[%s3] sm:$0xff] %vm123, %v122
    // Predicated region
    $region18: #{lightgcn_forward.1} parent=1 // pred_check
      _
    $region19: #{lightgcn_forward.1} parent=1 // pred_check_branch
      %126 = sbr.rel (0) target = $region21
    $region20: #{lightgcn_forward.1} parent=1 // pred_region
      _
    $region21: #{lightgcn_forward.1} parent=1 // pred_fallthru
      _
    // Predicated region
    $region22: #{lightgcn_forward.1} parent=1 // pred_check
      _
    $region23: #{lightgcn_forward.1} parent=1 // pred_check_branch
      %128 = sbr.rel (0) target = $region25
    $region24: #{lightgcn_forward.1} parent=1 // pred_region
      _
    $region25: #{lightgcn_forward.1} parent=1 // pred_fallthru
      _
    %129 = vsyncpa [#allocation3], 1

</llo_original>
